<compile_context>
chip_gen: v6e
topology: v6e:2x2x1
jax: 0.10.0
libtpu: 0.0.40
codegen_flags: <defaults>
</compile_context>

<pallas_src>
import math
import random
from functools import partial

import jax
import jax.numpy as jnp
from jax.experimental import pallas as pl
from jax.experimental.pallas import tpu as pltpu

_SUBLANE = 8
_LANE = 128
_TILE_ROWS = 2048          # (2048, 128) f32 block = 1 MiB per block
_JNP_FASTPATH_MAX = 64 * 1024


def _poly_kernel(coef_ref, x_ref, o_ref):
    # coef_ref: SMEM f32[6] -> [a, b, c, d, e4, e5]  (e4/e5 already masked scalars).
    a = coef_ref[0]
    b = coef_ref[1]
    c = coef_ref[2]
    d = coef_ref[3]
    e4 = coef_ref[4]
    e5 = coef_ref[5]

    # Upcast once so bf16 inputs also compute the Horner chain in f32 (v5e VPU has
    # no native bf16 math); store back in the output dtype.
    x = x_ref[...].astype(jnp.float32)
    acc = e4 + x * e5
    acc = d + x * acc
    acc = c + x * acc
    acc = b + x * acc
    acc = a + x * acc
    o_ref[...] = acc.astype(o_ref.dtype)


def _fold_coefs(params, n_extra):
    """Fold the dynamic extra-term count into scalar coefficients (scalar-only work)."""
    a, b, c, d, e = (params[i] for i in range(5))
    zero = jnp.zeros((), jnp.float32)
    e4 = jnp.where(n_extra >= 1, e, zero)
    e5 = jnp.where(n_extra >= 2, e, zero)
    return jnp.stack([a, b, c, d, e4, e5]).astype(jnp.float32)


@partial(jax.jit, static_argnames=("tile_rows",))
def _forward_pallas_impl(x, params, n_extra, *, tile_rows=_TILE_ROWS):
    n = x.shape[0]
    coefs = _fold_coefs(params, n_extra)

    # Pad only to the next 128-lane boundary (<= 127 elements).  When N is already
    # lane-aligned there is no pad and no output slice: the reshape below is a
    # contiguous row-major reshape (layout bitcast), so no extra HBM traffic.
    pad = (-n) % _LANE
    xp = jnp.pad(x, (0, pad)) if pad else x
    rows = (n + pad) // _LANE
    x2 = xp.reshape(rows, _LANE)

    if rows <= tile_rows:
        # Single block equal to the full array dims (allowed even if rows % 8 != 0).
        tr = rows
    else:
        # Multiple of the 8-row sublane; Pallas masks the partial last block, so rows
        # are NOT rounded up to a tile multiple (no junk DMA/compute past the array).
        tr = tile_rows

    out = pl.pallas_call(
        _poly_kernel,
        out_shape=jax.ShapeDtypeStruct((rows, _LANE), x.dtype),
        grid=(pl.cdiv(rows, tr),),
        in_specs=[
            pl.BlockSpec(memory_space=pltpu.MemorySpace.SMEM),  # coefficients (grid-invariant)
            pl.BlockSpec((tr, _LANE), lambda i: (i, 0)),        # x tile
        ],
        out_specs=pl.BlockSpec((tr, _LANE), lambda i: (i, 0)),
        compiler_params=pltpu.CompilerParams(
            # On v7x, switch to pltpu.CORE_PARALLEL if xprof shows one TC idle.
            dimension_semantics=("parallel",)),
    )(coefs, x2)

    flat = out.reshape(-1)
    return flat if pad == 0 else flat[:n]


@jax.jit
def _forward_jnp_impl(x, params, n_extra):
    # Small-N fast path: one fused XLA elementwise kernel beats the Pallas launch
    # plus surrounding layout ops for tiny inputs.
    coefs = _fold_coefs(params, n_extra)
    a, b, c, d, e4, e5 = (coefs[i] for i in range(6))
    xf = x.astype(jnp.float32)
    acc = e4 + xf * e5
    acc = d + xf * acc
    acc = c + xf * acc
    acc = b + xf * acc
    acc = a + xf * acc
    return acc.astype(x.dtype)


def dynamic_net_forward(x, params, n_extra, *, use_pallas=None):
    """x: float[N] flat vector; params: f32[5] = (a, b, c, d, e); n_extra in {0, 1, 2}."""
    ne = jnp.asarray(n_extra, jnp.int32)
    if use_pallas is None:
        use_pallas = x.shape[0] > _JNP_FASTPATH_MAX
    if use_pallas:
        return _forward_pallas_impl(x, params, ne)
    return _forward_jnp_impl(x, params, ne)


def reference_forward(x, params, n_extra):
    a, b, c, d, e = (params[i] for i in range(5))
    y = a + b * x + c * x ** 2 + d * x ** 3
    for exp in range(4, 4 + n_extra):
        y = y + e * x ** exp
    return y


if __name__ == "__main__":
    # Deterministic parameter init (stands in for torch.randn(()) x5).
    key = jax.random.PRNGKey(0)
    params = jax.random.normal(key, (5,), dtype=jnp.float32)

    # Deterministic stand-in for random.randint(4, 6): number of extra terms in {0,1,2}.
    random.seed(0)
    n_extra = random.randint(4, 6) - 4

    # Input consistent with the reference script: x = linspace(-pi, pi, 2000).
    x = jnp.linspace(-math.pi, math.pi, 2000, dtype=jnp.float32)

    atol, rtol = 1e-3, 1e-4  # f32 Horner vs expanded form; |x^5| ~ 3e2 near the ends

    # Force the Pallas path for the module-sized input (exercises the lane-padded tail).
    y = jax.block_until_ready(dynamic_net_forward(x, params, n_extra, use_pallas=True))
    y_ref = reference_forward(x, params, n_extra)
    assert y.shape == x.shape
    assert jnp.allclose(y, y_ref, atol=atol, rtol=rtol), "mismatch vs reference"

    # All dynamic term counts reuse the same compiled kernel (runtime scalar n_extra).
    for ne in (0, 1, 2):
        yy = jax.block_until_ready(dynamic_net_forward(x, params, ne, use_pallas=True))
        assert jnp.allclose(yy, reference_forward(x, params, ne), atol=atol, rtol=rtol)

    # Lane-aligned, multi-block input (grid = 2, partial last block, zero pad/slice path).
    n_big = (_TILE_ROWS + _SUBLANE) * _LANE
    xb = jnp.linspace(-math.pi, math.pi, n_big, dtype=jnp.float32)
    yb = jax.block_until_ready(dynamic_net_forward(xb, params, 2, use_pallas=True))
    assert jnp.allclose(yb, reference_forward(xb, params, 2), atol=atol, rtol=rtol)

    # Auto-dispatch small-N fast path (plain fused XLA, no Pallas launch).
    ys = jax.block_until_ready(dynamic_net_forward(x, params, n_extra))
    assert jnp.allclose(ys, y_ref, atol=atol, rtol=rtol)

    print("KERNEL_OK")
</pallas_src>

<mosaic_0001>
module attributes {stable_mosaic.version = 11 : i64} {
  func.func @_poly_kernel(%arg0: i32, %arg1: memref<6xf32, #tpu.memory_space<smem>>, %arg2: memref<16x128xf32, #tpu.memory_space<vmem>>, %arg3: memref<16x128xf32, #tpu.memory_space<vmem>>) attributes {dimension_semantics = [#tpu.dimension_semantics<parallel>], iteration_bounds = array<i64: 1>, scalar_prefetch = 0 : i64, scratch_operands = 0 : i64, tpu.core_type = #tpu.core_type<tc>, window_params = [{transform_indices = @transform_0, window_bounds = array<i64: 6>}, {transform_indices = @transform_1, window_bounds = array<i64: 16, 128>}, {transform_indices = @transform_2, window_bounds = array<i64: 16, 128>}]} {
    %c0 = arith.constant 0 : index
    %0 = memref.load %arg1[%c0] : memref<6xf32, #tpu.memory_space<smem>>
    %c1 = arith.constant 1 : index
    %1 = memref.load %arg1[%c1] : memref<6xf32, #tpu.memory_space<smem>>
    %c2 = arith.constant 2 : index
    %2 = memref.load %arg1[%c2] : memref<6xf32, #tpu.memory_space<smem>>
    %c3 = arith.constant 3 : index
    %3 = memref.load %arg1[%c3] : memref<6xf32, #tpu.memory_space<smem>>
    %c4 = arith.constant 4 : index
    %4 = memref.load %arg1[%c4] : memref<6xf32, #tpu.memory_space<smem>>
    %c5 = arith.constant 5 : index
    %5 = memref.load %arg1[%c5] : memref<6xf32, #tpu.memory_space<smem>>
    %c0_0 = arith.constant 0 : index
    %c0_1 = arith.constant 0 : index
    %6 = vector.load %arg2[%c0_0, %c0_1] : memref<16x128xf32, #tpu.memory_space<vmem>>, vector<16x128xf32>
    %7 = vector.broadcast %5 : f32 to vector<16x128xf32>
    %8 = arith.mulf %6, %7 : vector<16x128xf32>
    %9 = vector.broadcast %4 : f32 to vector<16x128xf32>
    %10 = arith.addf %9, %8 : vector<16x128xf32>
    %11 = arith.mulf %6, %10 : vector<16x128xf32>
    %12 = vector.broadcast %3 : f32 to vector<16x128xf32>
    %13 = arith.addf %12, %11 : vector<16x128xf32>
    %14 = arith.mulf %6, %13 : vector<16x128xf32>
    %15 = vector.broadcast %2 : f32 to vector<16x128xf32>
    %16 = arith.addf %15, %14 : vector<16x128xf32>
    %17 = arith.mulf %6, %16 : vector<16x128xf32>
    %18 = vector.broadcast %1 : f32 to vector<16x128xf32>
    %19 = arith.addf %18, %17 : vector<16x128xf32>
    %20 = arith.mulf %6, %19 : vector<16x128xf32>
    %21 = vector.broadcast %0 : f32 to vector<16x128xf32>
    %22 = arith.addf %21, %20 : vector<16x128xf32>
    %c0_2 = arith.constant 0 : index
    %c0_3 = arith.constant 0 : index
    %23 = vector.load %arg3[%c0_2, %c0_3] : memref<16x128xf32, #tpu.memory_space<vmem>>, vector<16x128xf32>
    tpu.vector_store %arg3[%c0_2, %c0_3], %22 {strides = array<i32>} : memref<16x128xf32, #tpu.memory_space<vmem>>, vector<16x128xf32>,
    return
  }
  func.func @transform_0(%arg0: i32) -> i32 {
    %c0_i32 = arith.constant 0 : i32
    %c0_i32_0 = arith.constant 0 : i32
    return %c0_i32 : i32
  }
  func.func @transform_1(%arg0: i32) -> (i32, i32) {
    %c0_i32 = arith.constant 0 : i32
    %c0_i32_0 = arith.constant 0 : i32
    return %arg0, %c0_i32 : i32, i32
  }
  func.func @transform_2(%arg0: i32) -> (i32, i32) {
    %c0_i32 = arith.constant 0 : i32
    %c0_i32_0 = arith.constant 0 : i32
    return %arg0, %c0_i32 : i32, i32
  }
}

</mosaic_0001>

<llo_original>
// kernel: _forward_pallas_impl.1
$region0: #{_forward_pallas_impl.1}
  #allocation0 [shape = 'u32[]', space=smem, size = 0x4, offset = 0x4, fixed_abs, tag = 'smem constant byte address 0x4 - core index']
  #allocation1 [shape = 'u32[144,128]{1,0:T(1,128)}', space=vmem, size = 0x12000, scoped, tag = 'internal scratch']
  %s0 = inlined_call_operand.vmem [shape: f32[6], index: 0, kind: input, shape index: {}]
  %s1 = inlined_call_operand.vmem [shape: f32[16,128], index: 1, kind: input, shape index: {}]
  %s2 = inlined_call_operand.hbm [shape: f32[16,128], index: 2, kind: output, shape index: {}]
  %s3 = sld [smem:[#allocation0]]
  $region22: #{_forward_pallas_impl.1} parent=0
    _
  %s5 = ssub.s32 1, %s3
  %s6 = scalar_select 0, %s5, %s3
  $region1: #{_forward_pallas_impl.1} parent=0
    #allocation2 [shape = 'u8[512]{0}', space=smem, size = 0x200, scoped, tag = 'input window, operand 0, single buffered']
    #allocation3 [shape = 's32[1]{0}', space=sflag, size = 0x4, scoped, tag = 'scoped memory for _forward_pallas_impl.1']
    #allocation4 [shape = 's32[1]{0}', space=sflag, size = 0x4, scoped, tag = 'scoped memory for _forward_pallas_impl.1']
    #allocation5 [shape = 'u8[8192]{0}', space=vmem, size = 0x2000, scoped, tag = 'output window, operand 0, single buffered']
    %7 = vsyncpa [#allocation4], 0
    %8 = vsyncpa [#allocation3], 0
    // Predicated region
    $region2: #{_forward_pallas_impl.1} parent=1 // pred_check
      _
    $region3: #{_forward_pallas_impl.1} parent=1 // pred_check_branch
      %10 = sbr.rel (0) target = $region5
    $region4: #{_forward_pallas_impl.1} parent=1 // pred_region
      %s12 = ssub.s32 16, 16
      %13 = vsyncadd [#allocation4], %s12
      %s15 = sshll.u32 %s0, 4
      %s16 = int_to_ptr.vmem [resolvable:$true] %s15
      %18 = dma.vmem_to_smem %s16, 16, [#allocation2], [#allocation4]
    $region5: #{_forward_pallas_impl.1} parent=1 // pred_fallthru
      _
    // Predicated region
    $region6: #{_forward_pallas_impl.1} parent=1 // pred_check
      _
    $region7: #{_forward_pallas_impl.1} parent=1 // pred_check_branch
      %20 = sbr.rel (0) target = $region9
    $region8: #{_forward_pallas_impl.1} parent=1 // pred_region
      _
    $region9: #{_forward_pallas_impl.1} parent=1 // pred_fallthru
      _
    // Predicated region
    $region10: #{_forward_pallas_impl.1} parent=1 // pred_check
      _
    $region11: #{_forward_pallas_impl.1} parent=1 // pred_check_branch
      %22 = sbr.rel (0) target = $region13
    $region12: #{_forward_pallas_impl.1} parent=1 // pred_region
      %23 = dma.done [#allocation4], 16
    $region13: #{_forward_pallas_impl.1} parent=1 // pred_fallthru
      _
    %24 = sfence
    %s25 = sld [smem:[#allocation2]]
    %s26 = sld [smem:[#allocation2 + $0x1]]
    %s27 = sld [smem:[#allocation2 + $0x2]]
    %s28 = sld [smem:[#allocation2 + $0x3]]
    %s29 = sld [smem:[#allocation2 + $0x4]]
    %s30 = sld [smem:[#allocation2 + $0x5]]
    %v31 = vld [vmem:[%s1] sm:$0xff]
    %v32 = vld [vmem:[%s1 + $0x8] sm:$0xff]
    %v33 = vstv %s30
    %v34 = vmul.f32 %v31, %v33
    %v35 = vmul.f32 %v32, %v33
    %v36 = vstv %s29
    %v37 = vadd.f32 %v36, %v34
    %v38 = vadd.f32 %v36, %v35
    %v39 = vmul.f32 %v31, %v37
    %v40 = vmul.f32 %v32, %v38
    %v41 = vstv %s28
    %v42 = vadd.f32 %v41, %v39
    %v43 = vadd.f32 %v41, %v40
    %v44 = vmul.f32 %v31, %v42
    %v45 = vmul.f32 %v32, %v43
    %v46 = vstv %s27
    %v47 = vadd.f32 %v46, %v44
    %v48 = vadd.f32 %v46, %v45
    %v49 = vmul.f32 %v31, %v47
    %v50 = vmul.f32 %v32, %v48
    %v51 = vstv %s26
    %v52 = vadd.f32 %v51, %v49
    %v53 = vadd.f32 %v51, %v50
    %v54 = vmul.f32 %v31, %v52
    %v55 = vmul.f32 %v32, %v53
    %v56 = vstv %s25
    %v57 = vadd.f32 %v56, %v54
    %v58 = vadd.f32 %v56, %v55
    %59 = vst [vmem:[#allocation5] sm:$0xff] %v57
    %60 = vst [vmem:[#allocation5 + $0x8] sm:$0xff] %v58
    // Predicated region
    $region14: #{_forward_pallas_impl.1} parent=1 // pred_check
      _
    $region15: #{_forward_pallas_impl.1} parent=1 // pred_check_branch
      %62 = sbr.rel (0) target = $region17
    $region16: #{_forward_pallas_impl.1} parent=1 // pred_region
      %s64 = ssub.s32 256, 256
      %65 = vsyncadd [#allocation3], %s64
      %s66 = sshll.u32 [#allocation5], 4
      %s67 = int_to_ptr.vmem [resolvable:$true] %s66
      %72 = dma.vmem_to_hbm [thread:$0]  %s67, 256, %s2, [#allocation3], 128, 128, 8
    $region17: #{_forward_pallas_impl.1} parent=1 // pred_fallthru
      _
    // Predicated region
    $region18: #{_forward_pallas_impl.1} parent=1 // pred_check
      _
    $region19: #{_forward_pallas_impl.1} parent=1 // pred_check_branch
      %74 = sbr.rel (0) target = $region21
    $region20: #{_forward_pallas_impl.1} parent=1 // pred_region
      %75 = dma.done [#allocation3], 256
    $region21: #{_forward_pallas_impl.1} parent=1 // pred_fallthru
      _
    %76 = vsyncpa [#allocation3], 1
    %77 = vsyncpa [#allocation4], 1

</llo_original>
